<compile_context>
chip_gen: v7x
topology: tpu7x:2x2x1
jax: 0.10.0
libtpu: 0.0.40
codegen_flags: <defaults>
</compile_context>

<pallas_src>
import jax
import jax.numpy as jnp
from jax.experimental import pallas as pl
from jax.experimental.pallas import tpu as pltpu

# ---- hyperparameters implied by the module's globals ----
n_embd = 32
num_heads = 4
head_size = n_embd // num_heads   # 8
block_size = 8                    # max sequence length (tril buffer size)
dropout = 0.0                     # TODO(synk): nn.Dropout is identity in eval; no RNG dropout in kernel.

B = 2
T = block_size                    # T <= block_size


# ----------------------------------------------------------------------------
# Fused kernel: qkv projection + block-masked attention + head sum + out proj
# ----------------------------------------------------------------------------
def _make_fused_mha_kernel(Bx, Tx, H, hs):
    C = H * hs

    def kernel(x_ref, params_ref, amask_ref, hmask_ref, o_ref):
        # ---- load + head-stack the activations (sublane copies only) ------
        x = x_ref[...]                                            # (Bx*Tx, C)
        # row (b, h, t) = x[b, t]  ->  heads stacked along the sublane axis
        x_stk = jnp.concatenate(
            [x[b * Tx:(b + 1) * Tx, :] for b in range(Bx) for _ in range(H)],
            axis=0)                                               # (Bx*H*Tx, C) = (64, 32)

        # ---- packed parameters (static sublane slices are free) -----------
        wq = params_ref[0 * C:1 * C, :]                           # (C, C), scale folded in
        wk = params_ref[1 * C:2 * C, :]                           # (C, C)
        wv = params_ref[2 * C:3 * C, :]                           # (C, C)
        wp = params_ref[3 * C:4 * C, :]                           # (C, C)  proj weight (already transposed)
        bp = params_ref[4 * C:4 * C + 1, :]                       # (1, C)  proj bias

        hmask = hmask_ref[...]                                    # (64, C) 0/1: keep own head's columns

        # ---- projections for ALL batches & heads at once (3 matmuls) ------
        q = jnp.dot(x_stk, wq, preferred_element_type=jnp.float32) * hmask
        k = jnp.dot(x_stk, wk, preferred_element_type=jnp.float32)
        v = jnp.dot(x_stk, wv, preferred_element_type=jnp.float32) * hmask

        # ---- one block-structured score matrix (q already head-masked) ----
        s = jax.lax.dot_general(q, k, (((1,), (1,)), ((), ())),
                                preferred_element_type=jnp.float32)   # (64, 64)
        s = s + amask_ref[...]                                    # additive 0 / -1e30 (block-diag + causal)

        # ---- one numerically-stable softmax over all 64 rows ---------------
        s = s - jnp.max(s, axis=-1, keepdims=True)
        p = jnp.exp(s)
        inv = pl.reciprocal(jnp.sum(p, axis=-1, keepdims=True), approx=True)
        p = p * inv

        # ---- one PV matmul; each row's result lives in its own head's cols -
        o = jnp.dot(p, v, preferred_element_type=jnp.float32)     # (64, C), block-sparse over head cols
        # summing the H row-groups == concatenating heads in head-major columns
        cat = jnp.sum(o.reshape(Bx, H, Tx, C), axis=1).reshape(Bx * Tx, C)

        # ---- output projection + bias, stored as one (B*T, C) slab ---------
        out = jnp.dot(cat, wp, preferred_element_type=jnp.float32) + bp
        o_ref[...] = out.astype(o_ref.dtype)

    return kernel


def multi_head_attention(x, fused_params):
    """x: (B, T, C).  fused_params = (params_packed (4C+1, C), amask (BHT,BHT), hmask (BHT,C))."""
    params_packed, amask, hmask = fused_params
    Bx, Tx, C = x.shape
    H = num_heads
    hs = C // H
    x_flat = x.reshape(Bx * Tx, C)                                # host-side reshape (free)

    out_flat = pl.pallas_call(
        _make_fused_mha_kernel(Bx, Tx, H, hs),
        out_shape=jax.ShapeDtypeStruct((Bx * Tx, C), jnp.float32),
        in_specs=[
            pl.BlockSpec(memory_space=pltpu.MemorySpace.VMEM),    # x
            pl.BlockSpec(memory_space=pltpu.MemorySpace.VMEM),    # packed weights + bias
            pl.BlockSpec(memory_space=pltpu.MemorySpace.VMEM),    # additive attention mask
            pl.BlockSpec(memory_space=pltpu.MemorySpace.VMEM),    # own-head column mask
        ],
        out_specs=pl.BlockSpec(memory_space=pltpu.MemorySpace.VMEM),
    )(x_flat, params_packed, amask, hmask)

    # TODO(synk): final nn.Dropout skipped (identity in eval mode).
    return out_flat.reshape(Bx, Tx, C)


# ----------------------------------------------------------------------------
# Parameters
# ----------------------------------------------------------------------------
def init_params(key):
    """Deterministic init mimicking PyTorch Linear default (uniform +/- 1/sqrt(fan_in))."""
    ks = jax.random.split(key, 5)
    bound = 1.0 / (n_embd ** 0.5)
    wq = jax.random.uniform(ks[0], (num_heads, n_embd, head_size), jnp.float32, -bound, bound)
    wk = jax.random.uniform(ks[1], (num_heads, n_embd, head_size), jnp.float32, -bound, bound)
    wv = jax.random.uniform(ks[2], (num_heads, n_embd, head_size), jnp.float32, -bound, bound)
    # proj: nn.Linear(n_embd, n_embd) computes x @ W^T + b; we store W^T.
    w_proj_t = jax.random.uniform(ks[3], (n_embd, n_embd), jnp.float32, -bound, bound)
    b_proj = jax.random.uniform(ks[4], (1, n_embd), jnp.float32, -bound, bound)
    return wq, wk, wv, w_proj_t, b_proj


def prepare_fused_params(params):
    """One-time host-side fusion: pack weights, fold score scale, bake masks."""
    wq, wk, wv, w_proj_t, b_proj = params
    H, C, hs = wq.shape
    # NOTE: PyTorch code scales scores by C ** 0.5 with C = n_embd (not head_size).
    scale = 1.0 / (float(C) ** 0.5)

    def to_wide(w):                           # (H, C, hs) -> (C, H*hs), head-major columns
        return jnp.transpose(w, (1, 0, 2)).reshape(C, H * hs)

    # One sublane-stacked parameter buffer: [wq*scale; wk; wv; w_proj^T; bias] -> (4C+1, C)
    params_packed = jnp.concatenate(
        [to_wide(wq * scale), to_wide(wk), to_wide(wv), w_proj_t, b_proj], axis=0
    ).astype(jnp.float32)

    # Additive attention mask over stacked (b, h, t) rows/cols:
    #   0 where same (b, h) block AND causal, -1e30 elsewhere.
    BHT = B * H * T
    idx = jnp.arange(BHT)
    blk = idx // T                           # (b*H + h) block id
    t = idx % T
    same_blk = blk[:, None] == blk[None, :]
    causal = t[None, :] <= t[:, None]
    amask = jnp.where(same_blk & causal, 0.0, -1e30).astype(jnp.float32)   # (BHT, BHT)

    # 0/1 mask keeping each stacked row's own head's columns (applied to q and v).
    h_of_row = blk % H
    col = jnp.arange(C)
    hmask = (col[None, :] // hs == h_of_row[:, None]).astype(jnp.float32)  # (BHT, C)

    return params_packed, amask, hmask


# ----------------------------------------------------------------------------
# Pure-JAX reference (uses the original, unfused parameters)
# ----------------------------------------------------------------------------
def reference_forward(x, params):
    wq, wk, wv, w_proj_t, b_proj = params
    q = jnp.einsum('btc,hcd->bhtd', x, wq)
    k = jnp.einsum('btc,hcd->bhtd', x, wk)
    v = jnp.einsum('btc,hcd->bhtd', x, wv)
    wei = jnp.einsum('bhtd,bhsd->bhts', q, k) / (n_embd ** 0.5)
    t = x.shape[1]
    mask = jnp.tril(jnp.ones((t, t), dtype=bool))
    wei = jnp.where(mask, wei, -jnp.inf)
    wei = jax.nn.softmax(wei, axis=-1)
    out = jnp.einsum('bhts,bhsd->bhtd', wei, v)
    cat = jnp.transpose(out, (0, 2, 1, 3)).reshape(x.shape[0], t, n_embd)
    return cat @ w_proj_t + b_proj


if __name__ == "__main__":
    key = jax.random.PRNGKey(0)
    k_x, k_p = jax.random.split(key)
    x = jax.random.normal(k_x, (B, T, n_embd), jnp.float32)
    params = init_params(k_p)
    fused_params = prepare_fused_params(params)

    out = multi_head_attention(x, fused_params)
    out = jax.block_until_ready(out)

    ref = reference_forward(x, params)
    assert out.shape == (B, T, n_embd), out.shape
    # Slightly loose tolerance: softmax denominator uses the EUP approximate
    # reciprocal (pl.reciprocal(..., approx=True)).
    assert jnp.allclose(out, ref, atol=2e-3, rtol=2e-3), "mismatch vs reference"

    print("KERNEL_OK")
</pallas_src>

<mosaic_0001>
module attributes {stable_mosaic.version = 11 : i64} {
  func.func @kernel(%arg0: memref<16x32xf32, #tpu.memory_space<vmem>>, %arg1: memref<129x32xf32, #tpu.memory_space<vmem>>, %arg2: memref<64x64xf32, #tpu.memory_space<vmem>>, %arg3: memref<64x32xf32, #tpu.memory_space<vmem>>, %arg4: memref<16x32xf32, #tpu.memory_space<vmem>>) attributes {dimension_semantics = [], scalar_prefetch = 0 : i64, scratch_operands = 0 : i64, tpu.core_type = #tpu.core_type<tc>} {
    %c0 = arith.constant 0 : index
    %c0_0 = arith.constant 0 : index
    %0 = vector.load %arg0[%c0, %c0_0] : memref<16x32xf32, #tpu.memory_space<vmem>>, vector<16x32xf32>
    %1 = vector.extract_strided_slice %0 {offsets = [0, 0], sizes = [8, 32], strides = [1, 1]} : vector<16x32xf32> to vector<8x32xf32>
    %2 = vector.extract_strided_slice %0 {offsets = [0, 0], sizes = [8, 32], strides = [1, 1]} : vector<16x32xf32> to vector<8x32xf32>
    %3 = vector.extract_strided_slice %0 {offsets = [0, 0], sizes = [8, 32], strides = [1, 1]} : vector<16x32xf32> to vector<8x32xf32>
    %4 = vector.extract_strided_slice %0 {offsets = [0, 0], sizes = [8, 32], strides = [1, 1]} : vector<16x32xf32> to vector<8x32xf32>
    %5 = vector.extract_strided_slice %0 {offsets = [8, 0], sizes = [8, 32], strides = [1, 1]} : vector<16x32xf32> to vector<8x32xf32>
    %6 = vector.extract_strided_slice %0 {offsets = [8, 0], sizes = [8, 32], strides = [1, 1]} : vector<16x32xf32> to vector<8x32xf32>
    %7 = vector.extract_strided_slice %0 {offsets = [8, 0], sizes = [8, 32], strides = [1, 1]} : vector<16x32xf32> to vector<8x32xf32>
    %8 = vector.extract_strided_slice %0 {offsets = [8, 0], sizes = [8, 32], strides = [1, 1]} : vector<16x32xf32> to vector<8x32xf32>
    %9 = tpu.concatenate %1, %2, %3, %4, %5, %6, %7, %8 in 0 : vector<8x32xf32>, vector<8x32xf32>, vector<8x32xf32>, vector<8x32xf32>, vector<8x32xf32>, vector<8x32xf32>, vector<8x32xf32>, vector<8x32xf32> -> vector<64x32xf32>
    %c0_1 = arith.constant 0 : index
    %c0_2 = arith.constant 0 : index
    %10 = vector.load %arg1[%c0_1, %c0_2] : memref<129x32xf32, #tpu.memory_space<vmem>>, vector<32x32xf32>
    %c32 = arith.constant 32 : index
    %c0_3 = arith.constant 0 : index
    %11 = vector.load %arg1[%c32, %c0_3] : memref<129x32xf32, #tpu.memory_space<vmem>>, vector<32x32xf32>
    %c64 = arith.constant 64 : index
    %c0_4 = arith.constant 0 : index
    %12 = vector.load %arg1[%c64, %c0_4] : memref<129x32xf32, #tpu.memory_space<vmem>>, vector<32x32xf32>
    %c96 = arith.constant 96 : index
    %c0_5 = arith.constant 0 : index
    %13 = vector.load %arg1[%c96, %c0_5] : memref<129x32xf32, #tpu.memory_space<vmem>>, vector<32x32xf32>
    %c128 = arith.constant 128 : index
    %c0_6 = arith.constant 0 : index
    %14 = vector.load %arg1[%c128, %c0_6] : memref<129x32xf32, #tpu.memory_space<vmem>>, vector<1x32xf32>
    %c0_7 = arith.constant 0 : index
    %c0_8 = arith.constant 0 : index
    %15 = vector.load %arg3[%c0_7, %c0_8] : memref<64x32xf32, #tpu.memory_space<vmem>>, vector<64x32xf32>
    %cst = arith.constant dense<0.000000e+00> : vector<64x32xf32>
    %16 = tpu.matmul %9, %10, %cst {dimension_numbers = #tpu.dot_dimension_numbers<[1], [0], [0], [1], [0, 0, 1, 1], [], []>} : vector<64x32xf32>, vector<32x32xf32>, vector<64x32xf32> -> vector<64x32xf32>
    %17 = arith.mulf %16, %15 : vector<64x32xf32>
    %cst_9 = arith.constant dense<0.000000e+00> : vector<64x32xf32>
    %18 = tpu.matmul %9, %11, %cst_9 {dimension_numbers = #tpu.dot_dimension_numbers<[1], [0], [0], [1], [0, 0, 1, 1], [], []>} : vector<64x32xf32>, vector<32x32xf32>, vector<64x32xf32> -> vector<64x32xf32>
    %cst_10 = arith.constant dense<0.000000e+00> : vector<64x32xf32>
    %19 = tpu.matmul %9, %12, %cst_10 {dimension_numbers = #tpu.dot_dimension_numbers<[1], [0], [0], [1], [0, 0, 1, 1], [], []>} : vector<64x32xf32>, vector<32x32xf32>, vector<64x32xf32> -> vector<64x32xf32>
    %20 = arith.mulf %19, %15 : vector<64x32xf32>
    %cst_11 = arith.constant dense<0.000000e+00> : vector<64x64xf32>
    %21 = tpu.matmul %17, %18, %cst_11 {dimension_numbers = #tpu.dot_dimension_numbers<[1], [1], [0], [0], [0, 0, 1, 0], [], []>} : vector<64x32xf32>, vector<64x32xf32>, vector<64x64xf32> -> vector<64x64xf32>
    %c0_12 = arith.constant 0 : index
    %c0_13 = arith.constant 0 : index
    %22 = vector.load %arg2[%c0_12, %c0_13] : memref<64x64xf32, #tpu.memory_space<vmem>>, vector<64x64xf32>
    %23 = arith.addf %21, %22 : vector<64x64xf32>
    %cst_14 = arith.constant dense<0xFF800000> : vector<64xf32>
    %24 = vector.multi_reduction <maximumf>, %23, %cst_14 [1] : vector<64x64xf32> to vector<64xf32>
    %25 = vector.shape_cast %24 : vector<64xf32> to vector<64x1xf32>
    %26 = vector.broadcast %25 : vector<64x1xf32> to vector<64x64xf32>
    %27 = arith.subf %23, %26 : vector<64x64xf32>
    %28 = math.exp %27 : vector<64x64xf32>
    %cst_15 = arith.constant dense<0.000000e+00> : vector<64xf32>
    %29 = vector.multi_reduction <add>, %28, %cst_15 [1] : vector<64x64xf32> to vector<64xf32>
    %30 = vector.shape_cast %29 : vector<64xf32> to vector<64x1xf32>
    %31 = tpu.reciprocal %30 {approx = true} : vector<64x1xf32> -> vector<64x1xf32>
    %32 = vector.broadcast %31 : vector<64x1xf32> to vector<64x64xf32>
    %33 = arith.mulf %28, %32 : vector<64x64xf32>
    %cst_16 = arith.constant dense<0.000000e+00> : vector<64x32xf32>
    %34 = tpu.matmul %33, %20, %cst_16 {dimension_numbers = #tpu.dot_dimension_numbers<[1], [0], [0], [1], [0, 0, 1, 1], [], []>} : vector<64x64xf32>, vector<64x32xf32>, vector<64x32xf32> -> vector<64x32xf32>
    %35 = vector.shape_cast %34 : vector<64x32xf32> to vector<2x4x8x32xf32>
    %cst_17 = arith.constant dense<0.000000e+00> : vector<2x8x32xf32>
    %36 = vector.multi_reduction <add>, %35, %cst_17 [1] : vector<2x4x8x32xf32> to vector<2x8x32xf32>
    %37 = vector.shape_cast %36 : vector<2x8x32xf32> to vector<16x32xf32>
    %cst_18 = arith.constant dense<0.000000e+00> : vector<16x32xf32>
    %38 = tpu.matmul %37, %13, %cst_18 {dimension_numbers = #tpu.dot_dimension_numbers<[1], [0], [0], [1], [0, 0, 1, 1], [], []>} : vector<16x32xf32>, vector<32x32xf32>, vector<16x32xf32> -> vector<16x32xf32>
    %39 = vector.broadcast %14 : vector<1x32xf32> to vector<16x32xf32>
    %40 = arith.addf %38, %39 : vector<16x32xf32>
    %c0_19 = arith.constant 0 : index
    %c0_20 = arith.constant 0 : index
    %41 = vector.load %arg4[%c0_19, %c0_20] : memref<16x32xf32, #tpu.memory_space<vmem>>, vector<16x32xf32>
    tpu.vector_store %arg4[%c0_19, %c0_20], %40 {strides = array<i32>} : memref<16x32xf32, #tpu.memory_space<vmem>>, vector<16x32xf32>,
    return
  }
}

</mosaic_0001>

<llo_original>
// kernel: tpu_custom_call.1
$region0: #{tpu_custom_call.1}
  #allocation0 [shape = 'u32[]', space=smem, size = 0x4, offset = 0x4, fixed_abs, tag = 'smem constant byte address 0x4 - core index']
  #allocation1 [shape = 'u32[144,128]{1,0:T(1,128)}', space=vmem, size = 0x12000, scoped, tag = 'internal scratch']
  %s0 = inlined_call_operand.vmem [shape: f32[16,32], index: 0, kind: input, shape index: {}]
  %s1 = inlined_call_operand.vmem [shape: f32[129,32], index: 1, kind: input, shape index: {}]
  %s2 = inlined_call_operand.vmem [shape: f32[64,64], index: 2, kind: input, shape index: {}]
  %s3 = inlined_call_operand.vmem [shape: f32[64,32], index: 3, kind: input, shape index: {}]
  %s4 = inlined_call_operand.hbm [shape: f32[16,32], index: 4, kind: output, shape index: {}]
  %s5 = sld [smem:[#allocation0]]
  $region26: #{tpu_custom_call.1} parent=0
    _
  %s7 = ssub.s32 1, %s5
  %s8 = scalar_select 0, %s7, %s5
  $region1: #{tpu_custom_call.1} parent=0
    #allocation2 [shape = 'u8[8192]{0}', space=vmem, size = 0x2000, scoped, tag = 'output window, operand 0, single buffered']
    #allocation3 [shape = 's32[1]{0}', space=sflag, size = 0x4, scoped, tag = 'scoped memory for tpu_custom_call.1']
    %9 = vsyncpa [#allocation3], 0
    // Predicated region
    $region2: #{tpu_custom_call.1} parent=1 // pred_check
      _
    $region3: #{tpu_custom_call.1} parent=1 // pred_check_branch
      %11 = sbr.rel (0) target = $region5
    $region4: #{tpu_custom_call.1} parent=1 // pred_region
      _
    $region5: #{tpu_custom_call.1} parent=1 // pred_fallthru
      _
    // Predicated region
    $region6: #{tpu_custom_call.1} parent=1 // pred_check
      _
    $region7: #{tpu_custom_call.1} parent=1 // pred_check_branch
      %13 = sbr.rel (0) target = $region9
    $region8: #{tpu_custom_call.1} parent=1 // pred_region
      _
    $region9: #{tpu_custom_call.1} parent=1 // pred_fallthru
      _
    // Predicated region
    $region10: #{tpu_custom_call.1} parent=1 // pred_check
      _
    $region11: #{tpu_custom_call.1} parent=1 // pred_check_branch
      %15 = sbr.rel (0) target = $region13
    $region12: #{tpu_custom_call.1} parent=1 // pred_region
      _
    $region13: #{tpu_custom_call.1} parent=1 // pred_fallthru
      _
    // Predicated region
    $region14: #{tpu_custom_call.1} parent=1 // pred_check
      _
    $region15: #{tpu_custom_call.1} parent=1 // pred_check_branch
      %17 = sbr.rel (0) target = $region17
    $region16: #{tpu_custom_call.1} parent=1 // pred_region
      _
    $region17: #{tpu_custom_call.1} parent=1 // pred_fallthru
      _
    %v18 = vld [vmem:[%s0] sm:$0xff]
    %v19 = vld [vmem:[%s0 + $0x8] sm:$0xff]
    %v20 = vld [vmem:[%s1] sm:$0xff]
    %v21 = vld [vmem:[%s1 + $0x8] sm:$0xff]
    %v22 = vld [vmem:[%s1 + $0x10] sm:$0xff]
    %v23 = vld [vmem:[%s1 + $0x18] sm:$0xff]
    %v24 = vld [vmem:[%s1 + $0x20] sm:$0xff]
    %v25 = vld [vmem:[%s1 + $0x28] sm:$0xff]
    %v26 = vld [vmem:[%s1 + $0x30] sm:$0xff]
    %v27 = vld [vmem:[%s1 + $0x38] sm:$0xff]
    %v28 = vld [vmem:[%s1 + $0x40] sm:$0xff]
    %v29 = vld [vmem:[%s1 + $0x48] sm:$0xff]
    %v30 = vld [vmem:[%s1 + $0x50] sm:$0xff]
    %v31 = vld [vmem:[%s1 + $0x58] sm:$0xff]
    %v32 = vld [vmem:[%s1 + $0x60] sm:$0xff]
    %v33 = vld [vmem:[%s1 + $0x68] sm:$0xff]
    %v34 = vld [vmem:[%s1 + $0x70] sm:$0xff]
    %v35 = vld [vmem:[%s1 + $0x78] sm:$0xff]
    %v36 = vld [vmem:[%s1 + $0x80] sm:$0x1]
    %v37 = vld [vmem:[%s3] sm:$0xff]
    %v38 = vld [vmem:[%s3 + $0x8] sm:$0xff]
    %v39 = vld [vmem:[%s3 + $0x10] sm:$0xff]
    %v40 = vld [vmem:[%s3 + $0x18] sm:$0xff]
    %v41 = vld [vmem:[%s3 + $0x20] sm:$0xff]
    %v42 = vld [vmem:[%s3 + $0x28] sm:$0xff]
    %v43 = vld [vmem:[%s3 + $0x30] sm:$0xff]
    %v44 = vld [vmem:[%s3 + $0x38] sm:$0xff]
    %vm45 = vcmask 261120
    %v47 = vsel %vm45, %v18, 0
    %v50 = vsel %vm45, %v19, 0
    %52 = vmatprep.subr.mxu0 0.0
    %53 = vmatpush1.msra.mxu0 %v20
    %54 = vmatprep.subr.mxu0 0.0
    %55 = vmatpush1.msra.mxu0 %v21
    %56 = vmatprep.subr.mxu0 0.0
    %57 = vmatpush1.msra.mxu0 %v22
    %58 = vmatprep.subr.mxu0 0.0
    %59 = vmatpush1.msra.mxu0 %v23
    %60 = vmatprep.subr.mxu0 0.0
    %61 = vmatpush1.msra.mxu0 0.0
    %62 = vmatprep.subr.mxu0 0.0
    %63 = vmatpush1.msra.mxu0 0.0
    %64 = vmatprep.subr.mxu0 0.0
    %65 = vmatpush1.msra.mxu0 0.0
    %66 = vmatprep.subr.mxu0 0.0
    %67 = vmatpush1.msra.mxu0 0.0
    %68 = vmatprep.subr.mxu0 0.0
    %69 = vmatpush1.msra.mxu0 0.0
    %70 = vmatprep.subr.mxu0 0.0
    %71 = vmatpush1.msra.mxu0 0.0
    %72 = vmatprep.subr.mxu0 0.0
    %73 = vmatpush1.msra.mxu0 0.0
    %74 = vmatprep.subr.mxu0 0.0
    %75 = vmatpush1.msra.mxu0 0.0
    %76 = vmatprep.subr.mxu0 0.0
    %77 = vmatpush1.msra.mxu0 0.0
    %78 = vmatprep.subr.mxu0 0.0
    %79 = vmatpush1.msra.mxu0 0.0
    %80 = vmatprep.subr.mxu0 0.0
    %81 = vmatpush1.msra.mxu0 0.0
    %82 = vmatprep.subr.mxu0 0.0
    %83 = vmatpush1.msra.mxu0 0.0
    %84 = vmatprep.subr.mxu0 0.0
    %85 = vmatpush1.msra.mxu0 0.0
    %86 = vmatprep.subr.mxu0 0.0
    %87 = vmatpush1.msra.mxu0 0.0
    %88 = vmatprep.subr.mxu0 0.0
    %89 = vmatpush1.msra.mxu0 0.0
    %90 = vmatprep.subr.mxu0 0.0
    %91 = vmatpush1.msra.mxu0 0.0
    %92 = vmatprep.subr.mxu0 0.0
    %93 = vmatpush1.msra.mxu0 0.0
    %94 = vmatprep.subr.mxu0 0.0
    %95 = vmatpush1.msra.mxu0 0.0
    %96 = vmatprep.subr.mxu0 0.0
    %97 = vmatpush1.msra.mxu0 0.0
    %98 = vmatprep.subr.mxu0 0.0
    %99 = vmatpush1.msra.mxu0 0.0
    %100 = vmatprep.subr.mxu0 0.0
    %101 = vmatpush1.msra.mxu0 0.0
    %102 = vmatprep.subr.mxu0 0.0
    %103 = vmatpush1.msra.mxu0 0.0
    %104 = vmatprep.subr.mxu0 0.0
    %105 = vmatpush1.msra.mxu0 0.0
    %106 = vmatprep.subr.mxu0 0.0
    %107 = vmatpush1.msra.mxu0 0.0
    %108 = vmatprep.subr.mxu0 0.0
    %109 = vmatpush1.msra.mxu0 0.0
    %110 = vmatprep.subr.mxu0 0.0
    %111 = vmatpush1.msra.mxu0 0.0
    %112 = vmatprep.subr.mxu0 0.0
    %113 = vmatpush1.msra.mxu0 0.0
    %114 = vmatprep.subr.mxu0 0.0
    %115 = vmatpush1.msra.mxu0 0.0
    %116 = vmatprep.mubr.f32.mxu0 0.0
    %117 = vmatmul.mubr.f32.gmra.mrb[0].mxu0 %v47
    %v118 = vpop.f32.mrb[0].mxu0
    %v119 = vadd.f32 0.0, %v118
    %v120 = vpop.f32.mrb[0].mxu0
    %121 = vmatprep.mubr.f32.mxu0 0.0
    %122 = vmatmul.mubr.f32.gmra.mrb[0].mxu0 %v47
    %v123 = vpop.f32.mrb[0].mxu0
    %v124 = vadd.f32 0.0, %v123
    %v125 = vpop.f32.mrb[0].mxu0
    %126 = vmatprep.mubr.f32.mxu0 0.0
    %127 = vmatmul.mubr.f32.gmra.mrb[0].mxu0 %v47
    %v128 = vpop.f32.mrb[0].mxu0
    %v129 = vadd.f32 0.0, %v128
    %v130 = vpop.f32.mrb[0].mxu0
    %131 = vmatprep.mubr.f32.mxu0 0.0
    %132 = vmatmul.mubr.f32.gmra.mrb[0].mxu0 %v47
    %v133 = vpop.f32.mrb[0].mxu0
    %v134 = vadd.f32 0.0, %v133
    %v135 = vpop.f32.mrb[0].mxu0
    %136 = vmatprep.mubr.f32.mxu0 0.0
    %137 = vmatmul.mubr.f32.gmra.mrb[0].mxu0 %v50
    %v138 = vpop.f32.mrb[0].mxu0
    %v139 = vadd.f32 0.0, %v138
    %v140 = vpop.f32.mrb[0].mxu0
    %141 = vmatprep.mubr.f32.mxu0 0.0
    %142 = vmatmul.mubr.f32.gmra.mrb[0].mxu0 %v50
    %v143 = vpop.f32.mrb[0].mxu0
    %v144 = vadd.f32 0.0, %v143
    %v145 = vpop.f32.mrb[0].mxu0
    %146 = vmatprep.mubr.f32.mxu0 0.0
    %147 = vmatmul.mubr.f32.gmra.mrb[0].mxu0 %v50
    %v148 = vpop.f32.mrb[0].mxu0
    %v149 = vadd.f32 0.0, %v148
    %v150 = vpop.f32.mrb[0].mxu0
    %151 = vmatprep.mubr.f32.mxu0 0.0
    %152 = vmatmul.mubr.f32.gmra.mrb[0].mxu0 %v50
    %v153 = vpop.f32.mrb[0].mxu0
    %v154 = vadd.f32 0.0, %v153
    %v155 = vpop.f32.mrb[0].mxu0
    %156 = vdwg.mxu0
    %v157 = vmul.f32 %v119, %v37
    %v158 = vmul.f32 %v124, %v38
    %v159 = vmul.f32 %v129, %v39
    %v160 = vmul.f32 %v134, %v40
    %v161 = vmul.f32 %v139, %v41
    %v162 = vmul.f32 %v144, %v42
    %v163 = vmul.f32 %v149, %v43
    %v164 = vmul.f32 %v154, %v44
    %165 = vmatprep.subr.mxu0 0.0
    %166 = vmatpush1.msra.mxu0 %v24
    %167 = vmatprep.subr.mxu0 0.0
    %168 = vmatpush1.msra.mxu0 %v25
    %169 = vmatprep.subr.mxu0 0.0
    %170 = vmatpush1.msra.mxu0 %v26
    %171 = vmatprep.subr.mxu0 0.0
    %172 = vmatpush1.msra.mxu0 %v27
    %173 = vmatprep.subr.mxu0 0.0
    %174 = vmatpush1.msra.mxu0 0.0
    %175 = vmatprep.subr.mxu0 0.0
    %176 = vmatpush1.msra.mxu0 0.0
    %177 = vmatprep.subr.mxu0 0.0
    %178 = vmatpush1.msra.mxu0 0.0
    %179 = vmatprep.subr.mxu0 0.0
    %180 = vmatpush1.msra.mxu0 0.0
    %181 = vmatprep.subr.mxu0 0.0
    %182 = vmatpush1.msra.mxu0 0.0
    %183 = vmatprep.subr.mxu0 0.0
    %184 = vmatpush1.msra.mxu0 0.0
    %185 = vmatprep.subr.mxu0 0.0
    %186 = vmatpush1.msra.mxu0 0.0
    %187 = vmatprep.subr.mxu0 0.0
    %188 = vmatpush1.msra.mxu0 0.0
    %189 = vmatprep.subr.mxu0 0.0
    %190 = vmatpush1.msra.mxu0 0.0
    %191 = vmatprep.subr.mxu0 0.0
    %192 = vmatpush1.msra.mxu0 0.0
    %193 = vmatprep.subr.mxu0 0.0
    %194 = vmatpush1.msra.mxu0 0.0
    %195 = vmatprep.subr.mxu0 0.0
    %196 = vmatpush1.msra.mxu0 0.0
    %197 = vmatprep.subr.mxu0 0.0
    %198 = vmatpush1.msra.mxu0 0.0
    %199 = vmatprep.subr.mxu0 0.0
    %200 = vmatpush1.msra.mxu0 0.0
    %201 = vmatprep.subr.mxu0 0.0
    %202 = vmatpush1.msra.mxu0 0.0
    %203 = vmatprep.subr.mxu0 0.0
    %204 = vmatpush1.msra.mxu0 0.0
    %205 = vmatprep.subr.mxu0 0.0
    %206 = vmatpush1.msra.mxu0 0.0
    %207 = vmatprep.subr.mxu0 0.0
    %208 = vmatpush1.msra.mxu0 0.0
    %209 = vmatprep.subr.mxu0 0.0
    %210 = vmatpush1.msra.mxu0 0.0
    %211 = vmatprep.subr.mxu0 0.0
    %212 = vmatpush1.msra.mxu0 0.0
    %213 = vmatprep.subr.mxu0 0.0
    %214 = vmatpush1.msra.mxu0 0.0
    %215 = vmatprep.subr.mxu0 0.0
    %216 = vmatpush1.msra.mxu0 0.0
    %217 = vmatprep.subr.mxu0 0.0
    %218 = vmatpush1.msra.mxu0 0.0
    %219 = vmatprep.subr.mxu0 0.0
    %220 = vmatpush1.msra.mxu0 0.0
    %221 = vmatprep.subr.mxu0 0.0
    %222 = vmatpush1.msra.mxu0 0.0
    %223 = vmatprep.subr.mxu0 0.0
    %224 = vmatpush1.msra.mxu0 0.0
    %225 = vmatprep.subr.mxu0 0.0
    %226 = vmatpush1.msra.mxu0 0.0
    %227 = vmatprep.subr.mxu0 0.0
    %228 = vmatpush1.msra.mxu0 0.0
    %229 = vmatprep.mubr.f32.mxu0 0.0
    %230 = vmatmul.mubr.f32.gmra.mrb[0].mxu0 %v47
    %v231 = vpop.f32.mrb[0].mxu0
    %v232 = vadd.f32 0.0, %v231
    %v233 = vpop.f32.mrb[0].mxu0
    %234 = vmatprep.mubr.f32.mxu0 0.0
    %235 = vmatmul.mubr.f32.gmra.mrb[0].mxu0 %v47
    %v236 = vpop.f32.mrb[0].mxu0
    %v237 = vadd.f32 0.0, %v236
    %v238 = vpop.f32.mrb[0].mxu0
    %239 = vmatprep.mubr.f32.mxu0 0.0
    %240 = vmatmul.mubr.f32.gmra.mrb[0].mxu0 %v47
    %v241 = vpop.f32.mrb[0].mxu0
    %v242 = vadd.f32 0.0, %v241
    %v243 = vpop.f32.mrb[0].mxu0
    %244 = vmatprep.mubr.f32.mxu0 0.0
    %245 = vmatmul.mubr.f32.gmra.mrb[0].mxu0 %v47
    %v246 = vpop.f32.mrb[0].mxu0
    %v247 = vadd.f32 0.0, %v246
    %v248 = vpop.f32.mrb[0].mxu0
    %249 = vmatprep.mubr.f32.mxu0 0.0
    %250 = vmatmul.mubr.f32.gmra.mrb[0].mxu0 %v50
    %v251 = vpop.f32.mrb[0].mxu0
    %v252 = vadd.f32 0.0, %v251
    %v253 = vpop.f32.mrb[0].mxu0
    %254 = vmatprep.mubr.f32.mxu0 0.0
    %255 = vmatmul.mubr.f32.gmra.mrb[0].mxu0 %v50
    %v256 = vpop.f32.mrb[0].mxu0
    %v257 = vadd.f32 0.0, %v256
    %v258 = vpop.f32.mrb[0].mxu0
    %259 = vmatprep.mubr.f32.mxu0 0.0
    %260 = vmatmul.mubr.f32.gmra.mrb[0].mxu0 %v50
    %v261 = vpop.f32.mrb[0].mxu0
    %v262 = vadd.f32 0.0, %v261
    %v263 = vpop.f32.mrb[0].mxu0
    %264 = vmatprep.mubr.f32.mxu0 0.0
    %265 = vmatmul.mubr.f32.gmra.mrb[0].mxu0 %v50
    %v266 = vpop.f32.mrb[0].mxu0
    %v267 = vadd.f32 0.0, %v266
    %v268 = vpop.f32.mrb[0].mxu0
    %269 = vdwg.mxu0
    %270 = vmatprep.subr.mxu0 0.0
    %271 = vmatpush1.msra.mxu0 %v28
    %272 = vmatprep.subr.mxu0 0.0
    %273 = vmatpush1.msra.mxu0 %v29
    %274 = vmatprep.subr.mxu0 0.0
    %275 = vmatpush1.msra.mxu0 %v30
    %276 = vmatprep.subr.mxu0 0.0
    %277 = vmatpush1.msra.mxu0 %v31
    %278 = vmatprep.subr.mxu0 0.0
    %279 = vmatpush1.msra.mxu0 0.0
    %280 = vmatprep.subr.mxu0 0.0
    %281 = vmatpush1.msra.mxu0 0.0
    %282 = vmatprep.subr.mxu0 0.0
    %283 = vmatpush1.msra.mxu0 0.0
    %284 = vmatprep.subr.mxu0 0.0
    %285 = vmatpush1.msra.mxu0 0.0
    %286 = vmatprep.subr.mxu0 0.0
    %287 = vmatpush1.msra.mxu0 0.0
    %288 = vmatprep.subr.mxu0 0.0
    %289 = vmatpush1.msra.mxu0 0.0
    %290 = vmatprep.subr.mxu0 0.0
    %291 = vmatpush1.msra.mxu0 0.0
    %292 = vmatprep.subr.mxu0 0.0
    %293 = vmatpush1.msra.mxu0 0.0
    %294 = vmatprep.subr.mxu0 0.0
    %295 = vmatpush1.msra.mxu0 0.0
    %296 = vmatprep.subr.mxu0 0.0
    %297 = vmatpush1.msra.mxu0 0.0
    %298 = vmatprep.subr.mxu0 0.0
    %299 = vmatpush1.msra.mxu0 0.0
    %300 = vmatprep.subr.mxu0 0.0
    %301 = vmatpush1.msra.mxu0 0.0
    %302 = vmatprep.subr.mxu0 0.0
    %303 = vmatpush1.msra.mxu0 0.0
    %304 = vmatprep.subr.mxu0 0.0
    %305 = vmatpush1.msra.mxu0 0.0
    %306 = vmatprep.subr.mxu0 0.0
    %307 = vmatpush1.msra.mxu0 0.0
    %308 = vmatprep.subr.mxu0 0.0
    %309 = vmatpush1.msra.mxu0 0.0
    %310 = vmatprep.subr.mxu0 0.0
    %311 = vmatpush1.msra.mxu0 0.0
    %312 = vmatprep.subr.mxu0 0.0
    %313 = vmatpush1.msra.mxu0 0.0
    %314 = vmatprep.subr.mxu0 0.0
    %315 = vmatpush1.msra.mxu0 0.0
    %316 = vmatprep.subr.mxu0 0.0
    %317 = vmatpush1.msra.mxu0 0.0
    %318 = vmatprep.subr.mxu0 0.0
    %319 = vmatpush1.msra.mxu0 0.0
    %320 = vmatprep.subr.mxu0 0.0
    %321 = vmatpush1.msra.mxu0 0.0
    %322 = vmatprep.subr.mxu0 0.0
    %323 = vmatpush1.msra.mxu0 0.0
    %324 = vmatprep.subr.mxu0 0.0
    %325 = vmatpush1.msra.mxu0 0.0
    %326 = vmatprep.subr.mxu0 0.0
    %327 = vmatpush1.msra.mxu0 0.0
    %328 = vmatprep.subr.mxu0 0.0
    %329 = vmatpush1.msra.mxu0 0.0
    %330 = vmatprep.subr.mxu0 0.0
    %331 = vmatpush1.msra.mxu0 0.0
    %332 = vmatprep.subr.mxu0 0.0
    %333 = vmatpush1.msra.mxu0 0.0
    %334 = vmatprep.mubr.f32.mxu0 0.0
    %335 = vmatmul.mubr.f32.gmra.mrb[0].mxu0 %v47
    %v336 = vpop.f32.mrb[0].mxu0
    %v337 = vadd.f32 0.0, %v336
    %v338 = vpop.f32.mrb[0].mxu0
    %339 = vmatprep.mubr.f32.mxu0 0.0
    %340 = vmatmul.mubr.f32.gmra.mrb[0].mxu0 %v47
    %v341 = vpop.f32.mrb[0].mxu0
    %v342 = vadd.f32 0.0, %v341
    %v343 = vpop.f32.mrb[0].mxu0
    %344 = vmatprep.mubr.f32.mxu0 0.0
    %345 = vmatmul.mubr.f32.gmra.mrb[0].mxu0 %v47
    %v346 = vpop.f32.mrb[0].mxu0
    %v347 = vadd.f32 0.0, %v346
    %v348 = vpop.f32.mrb[0].mxu0
    %349 = vmatprep.mubr.f32.mxu0 0.0
    %350 = vmatmul.mubr.f32.gmra.mrb[0].mxu0 %v47
    %v351 = vpop.f32.mrb[0].mxu0
    %v352 = vadd.f32 0.0, %v351
    %v353 = vpop.f32.mrb[0].mxu0
    %354 = vmatprep.mubr.f32.mxu0 0.0
    %355 = vmatmul.mubr.f32.gmra.mrb[0].mxu0 %v50
    %v356 = vpop.f32.mrb[0].mxu0
    %v357 = vadd.f32 0.0, %v356
    %v358 = vpop.f32.mrb[0].mxu0
    %359 = vmatprep.mubr.f32.mxu0 0.0
    %360 = vmatmul.mubr.f32.gmra.mrb[0].mxu0 %v50
    %v361 = vpop.f32.mrb[0].mxu0
    %v362 = vadd.f32 0.0, %v361
    %v363 = vpop.f32.mrb[0].mxu0
    %364 = vmatprep.mubr.f32.mxu0 0.0
    %365 = vmatmul.mubr.f32.gmra.mrb[0].mxu0 %v50
    %v366 = vpop.f32.mrb[0].mxu0
    %v367 = vadd.f32 0.0, %v366
    %v368 = vpop.f32.mrb[0].mxu0
    %369 = vmatprep.mubr.f32.mxu0 0.0
    %370 = vmatmul.mubr.f32.gmra.mrb[0].mxu0 %v50
    %v371 = vpop.f32.mrb[0].mxu0
    %v372 = vadd.f32 0.0, %v371
    %v373 = vpop.f32.mrb[0].mxu0
    %374 = vdwg.mxu0
    %v375 = vmul.f32 %v337, %v37
    %v376 = vmul.f32 %v342, %v38
    %v377 = vmul.f32 %v347, %v39
    %v378 = vmul.f32 %v352, %v40
    %v379 = vmul.f32 %v357, %v41
    %v380 = vmul.f32 %v362, %v42
    %v381 = vmul.f32 %v367, %v43
    %v382 = vmul.f32 %v372, %v44
    %v383 = vld [vmem:[%s2] sm:$0xff]
    %v384 = vld [vmem:[%s2 + $0x8] sm:$0xff]
    %v385 = vld [vmem:[%s2 + $0x10] sm:$0xff]
    %v386 = vld [vmem:[%s2 + $0x18] sm:$0xff]
    %v387 = vld [vmem:[%s2 + $0x20] sm:$0xff]
    %v388 = vld [vmem:[%s2 + $0x28] sm:$0xff]
    %v389 = vld [vmem:[%s2 + $0x30] sm:$0xff]
    %v390 = vld [vmem:[%s2 + $0x38] sm:$0xff]
    %v392 = vsel %vm45, %v157, 0
    %v395 = vsel %vm45, %v158, 0
    %v398 = vsel %vm45, %v159, 0
    %v401 = vsel %vm45, %v160, 0
    %v404 = vsel %vm45, %v161, 0
    %v407 = vsel %vm45, %v162, 0
    %v410 = vsel %vm45, %v163, 0
    %v413 = vsel %vm45, %v164, 0
    %v416 = vsel %vm45, %v232, 0
    %v419 = vsel %vm45, %v237, 0
    %v422 = vsel %vm45, %v242, 0
    %v425 = vsel %vm45, %v247, 0
    %v428 = vsel %vm45, %v252, 0
    %v431 = vsel %vm45, %v257, 0
    %v434 = vsel %vm45, %v262, 0
    %v437 = vsel %vm45, %v267, 0
    %439 = vmatprep.subr.mxu0 0.0
    %440 = vmatpush1.xpose.msra.mxu0 %v416
    %441 = vmatprep.subr.mxu0 0.0
    %442 = vmatpush1.xpose.msra.mxu0 %v419
    %443 = vmatprep.subr.mxu0 0.0
    %444 = vmatpush1.xpose.msra.mxu0 %v422
    %445 = vmatprep.subr.mxu0 0.0
    %446 = vmatpush1.xpose.msra.mxu0 %v425
    %447 = vmatprep.subr.mxu0 0.0
    %448 = vmatpush1.xpose.msra.mxu0 %v428
    %449 = vmatprep.subr.mxu0 0.0
    %450 = vmatpush1.xpose.msra.mxu0 %v431
    %451 = vmatprep.subr.mxu0 0.0
    %452 = vmatpush1.xpose.msra.mxu0 %v434
    %453 = vmatprep.subr.mxu0 0.0
    %454 = vmatpush1.xpose.msra.mxu0 %v437
    %455 = vmatprep.subr.mxu0 0.0
    %456 = vmatpush1.xpose.msra.mxu0 0.0
    %457 = vmatprep.subr.mxu0 0.0
    %458 = vmatpush1.xpose.msra.mxu0 0.0
    %459 = vmatprep.subr.mxu0 0.0
    %460 = vmatpush1.xpose.msra.mxu0 0.0
    %461 = vmatprep.subr.mxu0 0.0
    %462 = vmatpush1.xpose.msra.mxu0 0.0
    %463 = vmatprep.subr.mxu0 0.0
    %464 = vmatpush1.xpose.msra.mxu0 0.0
    %465 = vmatprep.subr.mxu0 0.0
    %466 = vmatpush1.xpose.msra.mxu0 0.0
    %467 = vmatprep.subr.mxu0 0.0
    %468 = vmatpush1.xpose.msra.mxu0 0.0
    %469 = vmatprep.subr.mxu0 0.0
    %470 = vmatpush1.xpose.msra.mxu0 0.0
    %471 = vmatprep.subr.mxu0 0.0
    %472 = vmatpush1.xpose.msra.mxu0 0.0
    %473 = vmatprep.subr.mxu0 0.0
    %474 = vmatpush1.xpose.msra.mxu0 0.0
    %475 = vmatprep.subr.mxu0 0.0
    %476 = vmatpush1.xpose.msra.mxu0 0.0
    %477 = vmatprep.subr.mxu0 0.0
    %478 = vmatpush1.xpose.msra.mxu0 0.0
    %479 = vmatprep.subr.mxu0 0.0
    %480 = vmatpush1.xpose.msra.mxu0 0.0
    %481 = vmatprep.subr.mxu0 0.0
    %482 = vmatpush1.xpose.msra.mxu0 0.0
    %483 = vmatprep.subr.mxu0 0.0
    %484 = vmatpush1.xpose.msra.mxu0 0.0
    %485 = vmatprep.subr.mxu0 0.0
    %486 = vmatpush1.xpose.msra.mxu0 0.0
    %487 = vmatprep.subr.mxu0 0.0
    %488 = vmatpush1.xpose.msra.mxu0 0.0
    %489 = vmatprep.subr.mxu0 0.0
    %490 = vmatpush1.xpose.msra.mxu0 0.0
    %491 = vmatprep.subr.mxu0 0.0
    %492 = vmatpush1.xpose.msra.mxu0 0.0
    %493 = vmatprep.subr.mxu0 0.0
    %494 = vmatpush1.xpose.msra.mxu0 0.0
    %495 = vmatprep.subr.mxu0 0.0
    %496 = vmatpush1.xpose.msra.mxu0 0.0
    %497 = vmatprep.subr.mxu0 0.0
    %498 = vmatpush1.xpose.msra.mxu0 0.0
    %499 = vmatprep.subr.mxu0 0.0
    %500 = vmatpush1.xpose.msra.mxu0 0.0
    %501 = vmatprep.subr.mxu0 0.0
    %502 = vmatpush1.xpose.msra.mxu0 0.0
    %503 = vmatprep.mubr.f32.mxu0 0.0
    %504 = vmatmul.mubr.f32.gmra.mrb[0].mxu0 %v392
    %v505 = vpop.f32.mrb[0].mxu0
    %v506 = vadd.f32 %v383, %v505
    %v507 = vpop.f32.mrb[0].mxu0
    %508 = vmatprep.mubr.f32.mxu0 0.0
    %509 = vmatmul.mubr.f32.gmra.mrb[0].mxu0 %v395
    %v510 = vpop.f32.mrb[0].mxu0
    %v511 = vadd.f32 %v384, %v510
    %v512 = vpop.f32.mrb[0].mxu0
    %513 = vmatprep.mubr.f32.mxu0 0.0
    %514 = vmatmul.mubr.f32.gmra.mrb[0].mxu0 %v398
    %v515 = vpop.f32.mrb[0].mxu0
    %v516 = vadd.f32 %v385, %v515
    %v517 = vpop.f32.mrb[0].mxu0
    %518 = vmatprep.mubr.f32.mxu0 0.0
    %519 = vmatmul.mubr.f32.gmra.mrb[0].mxu0 %v401
    %v520 = vpop.f32.mrb[0].mxu0
    %v521 = vadd.f32 %v386, %v520
    %v522 = vpop.f32.mrb[0].mxu0
    %523 = vmatprep.mubr.f32.mxu0 0.0
    %524 = vmatmul.mubr.f32.gmra.mrb[0].mxu0 %v404
    %v525 = vpop.f32.mrb[0].mxu0
    %v526 = vadd.f32 %v387, %v525
    %v527 = vpop.f32.mrb[0].mxu0
    %528 = vmatprep.mubr.f32.mxu0 0.0
    %529 = vmatmul.mubr.f32.gmra.mrb[0].mxu0 %v407
    %v530 = vpop.f32.mrb[0].mxu0
    %v531 = vadd.f32 %v388, %v530
    %v532 = vpop.f32.mrb[0].mxu0
    %533 = vmatprep.mubr.f32.mxu0 0.0
    %534 = vmatmul.mubr.f32.gmra.mrb[0].mxu0 %v410
    %v535 = vpop.f32.mrb[0].mxu0
    %v536 = vadd.f32 %v389, %v535
    %v537 = vpop.f32.mrb[0].mxu0
    %538 = vmatprep.mubr.f32.mxu0 0.0
    %539 = vmatmul.mubr.f32.gmra.mrb[0].mxu0 %v413
    %v540 = vpop.f32.mrb[0].mxu0
    %v541 = vadd.f32 %v390, %v540
    %v542 = vpop.f32.mrb[0].mxu0
    %543 = vdwg.mxu0
    %vm544 = vcmask 523264
    %v545 = vsel %vm544, %v506, -inf
    %546 = vmax.xlane.f32.xlu0 %v545
    %v547 = vpop.xlane.xlu0 %546
    %v548 = vsel %vm544, %v511, -inf
    %549 = vmax.xlane.f32.xlu0 %v548
    %v550 = vpop.xlane.xlu0 %549
    %v551 = vsel %vm544, %v516, -inf
    %552 = vmax.xlane.f32.xlu0 %v551
    %v553 = vpop.xlane.xlu0 %552
    %v554 = vsel %vm544, %v521, -inf
    %555 = vmax.xlane.f32.xlu0 %v554
    %v556 = vpop.xlane.xlu0 %555
    %v557 = vsel %vm544, %v526, -inf
    %558 = vmax.xlane.f32.xlu0 %v557
    %v559 = vpop.xlane.xlu0 %558
    %v560 = vsel %vm544, %v531, -inf
    %561 = vmax.xlane.f32.xlu0 %v560
    %v562 = vpop.xlane.xlu0 %561
    %v563 = vsel %vm544, %v536, -inf
    %564 = vmax.xlane.f32.xlu0 %v563
    %v565 = vpop.xlane.xlu0 %564
    %v566 = vsel %vm544, %v541, -inf
    %567 = vmax.xlane.f32.xlu0 %v566
    %v568 = vpop.xlane.xlu0 %567
    %v569 = vsub.f32 %v506, %v547
    %v570 = vsub.f32 %v511, %v550
    %v571 = vsub.f32 %v516, %v553
    %v572 = vsub.f32 %v521, %v556
    %v573 = vsub.f32 %v526, %v559
    %v574 = vsub.f32 %v531, %v562
    %v575 = vsub.f32 %v536, %v565
    %v576 = vsub.f32 %v541, %v568
    %v577 = vmul.f32 %v569, 1.442695
    %v578 = vpow.pop %v577
    %v579 = vmul.f32 %v570, 1.442695
    %v580 = vpow.pop %v579
    %v581 = vmul.f32 %v571, 1.442695
    %v582 = vpow.pop %v581
    %v583 = vmul.f32 %v572, 1.442695
    %v584 = vpow.pop %v583
    %v585 = vmul.f32 %v573, 1.442695
    %v586 = vpow.pop %v585
    %v587 = vmul.f32 %v574, 1.442695
    %v588 = vpow.pop %v587
    %v589 = vmul.f32 %v575, 1.442695
    %v590 = vpow.pop %v589
    %v591 = vmul.f32 %v576, 1.442695
    %v592 = vpow.pop %v591
    %v593 = vsel %vm544, %v578, 0.0
    %594 = vadd.xlane.f32.xlu0 %v593
    %v595 = vpop.xlane.xlu0 %594
    %v596 = vsel %vm544, %v580, 0.0
    %597 = vadd.xlane.f32.xlu0 %v596
    %v598 = vpop.xlane.xlu0 %597
    %v599 = vsel %vm544, %v582, 0.0
    %600 = vadd.xlane.f32.xlu0 %v599
    %v601 = vpop.xlane.xlu0 %600
    %v602 = vsel %vm544, %v584, 0.0
    %603 = vadd.xlane.f32.xlu0 %v602
    %v604 = vpop.xlane.xlu0 %603
    %v605 = vsel %vm544, %v586, 0.0
    %606 = vadd.xlane.f32.xlu0 %v605
    %v607 = vpop.xlane.xlu0 %606
    %v608 = vsel %vm544, %v588, 0.0
    %609 = vadd.xlane.f32.xlu0 %v608
    %v610 = vpop.xlane.xlu0 %609
    %v611 = vsel %vm544, %v590, 0.0
    %612 = vadd.xlane.f32.xlu0 %v611
    %v613 = vpop.xlane.xlu0 %612
    %v614 = vsel %vm544, %v592, 0.0
    %615 = vadd.xlane.f32.xlu0 %v614
    %v616 = vpop.xlane.xlu0 %615
    %v617 = vrcp.pop %v595
    %v618 = vrcp.pop %v598
    %v619 = vrcp.pop %v601
    %v620 = vrcp.pop %v604
    %v621 = vrcp.pop %v607
    %v622 = vrcp.pop %v610
    %v623 = vrcp.pop %v613
    %v624 = vrcp.pop %v616
    %v625 = vmul.f32 %v578, %v617
    %v626 = vmul.f32 %v580, %v618
    %v627 = vmul.f32 %v582, %v619
    %v628 = vmul.f32 %v584, %v620
    %v629 = vmul.f32 %v586, %v621
    %v630 = vmul.f32 %v588, %v622
    %v631 = vmul.f32 %v590, %v623
    %v632 = vmul.f32 %v592, %v624
    %v634 = vsel %vm544, %v625, 0
    %v637 = vsel %vm544, %v626, 0
    %v640 = vsel %vm544, %v627, 0
    %v643 = vsel %vm544, %v628, 0
    %v646 = vsel %vm544, %v629, 0
    %v649 = vsel %vm544, %v630, 0
    %v652 = vsel %vm544, %v631, 0
    %v655 = vsel %vm544, %v632, 0
    %657 = vmatprep.subr.mxu0 0.0
    %658 = vmatpush1.msra.mxu0 %v375
    %659 = vmatprep.subr.mxu0 0.0
    %660 = vmatpush1.msra.mxu0 %v376
    %661 = vmatprep.subr.mxu0 0.0
    %662 = vmatpush1.msra.mxu0 %v377
    %663 = vmatprep.subr.mxu0 0.0
    %664 = vmatpush1.msra.mxu0 %v378
    %665 = vmatprep.subr.mxu0 0.0
    %666 = vmatpush1.msra.mxu0 %v379
    %667 = vmatprep.subr.mxu0 0.0
    %668 = vmatpush1.msra.mxu0 %v380
    %669 = vmatprep.subr.mxu0 0.0
    %670 = vmatpush1.msra.mxu0 %v381
    %671 = vmatprep.subr.mxu0 0.0
    %672 = vmatpush1.msra.mxu0 %v382
    %673 = vmatprep.subr.mxu0 0.0
    %674 = vmatpush1.msra.mxu0 0.0
    %675 = vmatprep.subr.mxu0 0.0
    %676 = vmatpush1.msra.mxu0 0.0
    %677 = vmatprep.subr.mxu0 0.0
    %678 = vmatpush1.msra.mxu0 0.0
    %679 = vmatprep.subr.mxu0 0.0
    %680 = vmatpush1.msra.mxu0 0.0
    %681 = vmatprep.subr.mxu0 0.0
    %682 = vmatpush1.msra.mxu0 0.0
    %683 = vmatprep.subr.mxu0 0.0
    %684 = vmatpush1.msra.mxu0 0.0
    %685 = vmatprep.subr.mxu0 0.0
    %686 = vmatpush1.msra.mxu0 0.0
    %687 = vmatprep.subr.mxu0 0.0
    %688 = vmatpush1.msra.mxu0 0.0
    %689 = vmatprep.subr.mxu0 0.0
    %690 = vmatpush1.msra.mxu0 0.0
    %691 = vmatprep.subr.mxu0 0.0
    %692 = vmatpush1.msra.mxu0 0.0
    %693 = vmatprep.subr.mxu0 0.0
    %694 = vmatpush1.msra.mxu0 0.0
    %695 = vmatprep.subr.mxu0 0.0
    %696 = vmatpush1.msra.mxu0 0.0
    %697 = vmatprep.subr.mxu0 0.0
    %698 = vmatpush1.msra.mxu0 0.0
    %699 = vmatprep.subr.mxu0 0.0
    %700 = vmatpush1.msra.mxu0 0.0
    %701 = vmatprep.subr.mxu0 0.0
    %702 = vmatpush1.msra.mxu0 0.0
    %703 = vmatprep.subr.mxu0 0.0
    %704 = vmatpush1.msra.mxu0 0.0
    %705 = vmatprep.subr.mxu0 0.0
    %706 = vmatpush1.msra.mxu0 0.0
    %707 = vmatprep.subr.mxu0 0.0
    %708 = vmatpush1.msra.mxu0 0.0
    %709 = vmatprep.subr.mxu0 0.0
    %710 = vmatpush1.msra.mxu0 0.0
    %711 = vmatprep.subr.mxu0 0.0
    %712 = vmatpush1.msra.mxu0 0.0
    %713 = vmatprep.subr.mxu0 0.0
    %714 = vmatpush1.msra.mxu0 0.0
    %715 = vmatprep.subr.mxu0 0.0
    %716 = vmatpush1.msra.mxu0 0.0
    %717 = vmatprep.subr.mxu0 0.0
    %718 = vmatpush1.msra.mxu0 0.0
    %719 = vmatprep.subr.mxu0 0.0
    %720 = vmatpush1.msra.mxu0 0.0
    %721 = vmatprep.mubr.f32.mxu0 0.0
    %722 = vmatmul.mubr.f32.gmra.mrb[0].mxu0 %v634
    %v723 = vpop.f32.mrb[0].mxu0
    %v724 = vadd.f32 0.0, %v723
    %v725 = vpop.f32.mrb[0].mxu0
    %726 = vmatprep.mubr.f32.mxu0 0.0
    %727 = vmatmul.mubr.f32.gmra.mrb[0].mxu0 %v637
    %v728 = vpop.f32.mrb[0].mxu0
    %v729 = vadd.f32 0.0, %v728
    %v730 = vpop.f32.mrb[0].mxu0
    %731 = vmatprep.mubr.f32.mxu0 0.0
    %732 = vmatmul.mubr.f32.gmra.mrb[0].mxu0 %v640
    %v733 = vpop.f32.mrb[0].mxu0
    %v734 = vadd.f32 0.0, %v733
    %v735 = vpop.f32.mrb[0].mxu0
    %736 = vmatprep.mubr.f32.mxu0 0.0
    %737 = vmatmul.mubr.f32.gmra.mrb[0].mxu0 %v643
    %v738 = vpop.f32.mrb[0].mxu0
    %v739 = vadd.f32 0.0, %v738
    %v740 = vpop.f32.mrb[0].mxu0
    %741 = vmatprep.mubr.f32.mxu0 0.0
    %742 = vmatmul.mubr.f32.gmra.mrb[0].mxu0 %v646
    %v743 = vpop.f32.mrb[0].mxu0
    %v744 = vadd.f32 0.0, %v743
    %v745 = vpop.f32.mrb[0].mxu0
    %746 = vmatprep.mubr.f32.mxu0 0.0
    %747 = vmatmul.mubr.f32.gmra.mrb[0].mxu0 %v649
    %v748 = vpop.f32.mrb[0].mxu0
    %v749 = vadd.f32 0.0, %v748
    %v750 = vpop.f32.mrb[0].mxu0
    %751 = vmatprep.mubr.f32.mxu0 0.0
    %752 = vmatmul.mubr.f32.gmra.mrb[0].mxu0 %v652
    %v753 = vpop.f32.mrb[0].mxu0
    %v754 = vadd.f32 0.0, %v753
    %v755 = vpop.f32.mrb[0].mxu0
    %756 = vmatprep.mubr.f32.mxu0 0.0
    %757 = vmatmul.mubr.f32.gmra.mrb[0].mxu0 %v655
    %v758 = vpop.f32.mrb[0].mxu0
    %v759 = vadd.f32 0.0, %v758
    %v760 = vpop.f32.mrb[0].mxu0
    %761 = vdwg.mxu0
    %v762 = vsel %vm45, %v724, 0.0
    %v763 = vsel %vm45, %v729, 0.0
    %v764 = vadd.f32 %v762, %v763
    %v765 = vsel %vm45, %v734, 0.0
    %v766 = vadd.f32 %v764, %v765
    %v767 = vsel %vm45, %v739, 0.0
    %v768 = vadd.f32 %v766, %v767
    %v769 = vsel %vm45, %v744, 0.0
    %v770 = vsel %vm45, %v749, 0.0
    %v771 = vadd.f32 %v769, %v770
    %v772 = vsel %vm45, %v754, 0.0
    %v773 = vadd.f32 %v771, %v772
    %v774 = vsel %vm45, %v759, 0.0
    %v775 = vadd.f32 %v773, %v774
    %v776 = vlaneseq
    %v777 = vshrl.u32 %v776, 7
    %v778 = vsub.s32 0, %v777
    %v779 = vrot.slane %v36, %v778
    %v781 = vsel %vm45, %v768, 0
    %v784 = vsel %vm45, %v775, 0
    %786 = vmatprep.subr.mxu0 0.0
    %787 = vmatpush1.msra.mxu0 %v32
    %788 = vmatprep.subr.mxu0 0.0
    %789 = vmatpush1.msra.mxu0 %v33
    %790 = vmatprep.subr.mxu0 0.0
    %791 = vmatpush1.msra.mxu0 %v34
    %792 = vmatprep.subr.mxu0 0.0
    %793 = vmatpush1.msra.mxu0 %v35
    %794 = vmatprep.subr.mxu0 0.0
    %795 = vmatpush1.msra.mxu0 0.0
    %796 = vmatprep.subr.mxu0 0.0
    %797 = vmatpush1.msra.mxu0 0.0
    %798 = vmatprep.subr.mxu0 0.0
    %799 = vmatpush1.msra.mxu0 0.0
    %800 = vmatprep.subr.mxu0 0.0
    %801 = vmatpush1.msra.mxu0 0.0
    %802 = vmatprep.subr.mxu0 0.0
    %803 = vmatpush1.msra.mxu0 0.0
    %804 = vmatprep.subr.mxu0 0.0
    %805 = vmatpush1.msra.mxu0 0.0
    %806 = vmatprep.subr.mxu0 0.0
    %807 = vmatpush1.msra.mxu0 0.0
    %808 = vmatprep.subr.mxu0 0.0
    %809 = vmatpush1.msra.mxu0 0.0
    %810 = vmatprep.subr.mxu0 0.0
    %811 = vmatpush1.msra.mxu0 0.0
    %812 = vmatprep.subr.mxu0 0.0
    %813 = vmatpush1.msra.mxu0 0.0
    %814 = vmatprep.subr.mxu0 0.0
    %815 = vmatpush1.msra.mxu0 0.0
    %816 = vmatprep.subr.mxu0 0.0
    %817 = vmatpush1.msra.mxu0 0.0
    %818 = vmatprep.subr.mxu0 0.0
    %819 = vmatpush1.msra.mxu0 0.0
    %820 = vmatprep.subr.mxu0 0.0
    %821 = vmatpush1.msra.mxu0 0.0
    %822 = vmatprep.subr.mxu0 0.0
    %823 = vmatpush1.msra.mxu0 0.0
    %824 = vmatprep.subr.mxu0 0.0
    %825 = vmatpush1.msra.mxu0 0.0
    %826 = vmatprep.subr.mxu0 0.0
    %827 = vmatpush1.msra.mxu0 0.0
    %828 = vmatprep.subr.mxu0 0.0
    %829 = vmatpush1.msra.mxu0 0.0
    %830 = vmatprep.subr.mxu0 0.0
    %831 = vmatpush1.msra.mxu0 0.0
    %832 = vmatprep.subr.mxu0 0.0
    %833 = vmatpush1.msra.mxu0 0.0
    %834 = vmatprep.subr.mxu0 0.0
    %835 = vmatpush1.msra.mxu0 0.0
    %836 = vmatprep.subr.mxu0 0.0
    %837 = vmatpush1.msra.mxu0 0.0
    %838 = vmatprep.subr.mxu0 0.0
    %839 = vmatpush1.msra.mxu0 0.0
    %840 = vmatprep.subr.mxu0 0.0
    %841 = vmatpush1.msra.mxu0 0.0
    %842 = vmatprep.subr.mxu0 0.0
    %843 = vmatpush1.msra.mxu0 0.0
    %844 = vmatprep.subr.mxu0 0.0
    %845 = vmatpush1.msra.mxu0 0.0
    %846 = vmatprep.subr.mxu0 0.0
    %847 = vmatpush1.msra.mxu0 0.0
    %848 = vmatprep.subr.mxu0 0.0
    %849 = vmatpush1.msra.mxu0 0.0
    %850 = vmatprep.mubr.f32.mxu0 0.0
    %851 = vmatmul.mubr.f32.gmra.mrb[0].mxu0 %v781
    %v852 = vpop.f32.mrb[0].mxu0
    %v853 = vadd.f32 %v779, %v852
    %v854 = vpop.f32.mrb[0].mxu0
    %855 = vmatprep.mubr.f32.mxu0 0.0
    %856 = vmatmul.mubr.f32.gmra.mrb[0].mxu0 %v784
    %v857 = vpop.f32.mrb[0].mxu0
    %v858 = vadd.f32 %v779, %v857
    %v859 = vpop.f32.mrb[0].mxu0
    %860 = vdwg.mxu0
    %861 = vst.msk [vmem:[#allocation2] sm:$0xff] %vm45, %v853
    %862 = vst.msk [vmem:[#allocation2 + $0x8] sm:$0xff] %vm45, %v858
    // Predicated region
    $region18: #{tpu_custom_call.1} parent=1 // pred_check
      _
    $region19: #{tpu_custom_call.1} parent=1 // pred_check_branch
      %864 = sbr.rel (0) target = $region21
    $region20: #{tpu_custom_call.1} parent=1 // pred_region
      %s866 = ssub.s32 256, 256
      %867 = vsyncadd [#allocation3], %s866
      %s868 = sshll.u32 [#allocation2], 4
      %s869 = int_to_ptr.vmem [resolvable:$true] %s868
      %874 = dma.vmem_to_hbm [thread:$0]  %s869, 256, %s4, [#allocation3], 128, 128, 8
    $region21: #{tpu_custom_call.1} parent=1 // pred_fallthru
      _
    // Predicated region
    $region22: #{tpu_custom_call.1} parent=1 // pred_check
      _
    $region23: #{tpu_custom_call.1} parent=1 // pred_check_branch
      %876 = sbr.rel (0) target = $region25
    $region24: #{tpu_custom_call.1} parent=1 // pred_region
      %877 = dma.done [#allocation3], 256
    $region25: #{tpu_custom_call.1} parent=1 // pred_fallthru
      _
    %878 = vsyncpa [#allocation3], 1

</llo_original>
